<compile_context>
chip_gen: v7x
topology: tpu7x:2x2x1
jax: 0.10.0
libtpu: 0.0.40
codegen_flags: <defaults>
</compile_context>

<pallas_src>
import functools

import jax
import jax.numpy as jnp
from jax import lax
from jax.experimental import pallas as pl
from jax.experimental.pallas import tpu as pltpu


def _conv2d_kernel(x_ref, w_ref, b_ref, mask_ref, o_ref, patch_ref, *, H, W, K, Cin, Cout):
    """One batch element per grid step, flat-NCHW layout.

    x_ref:     (1, Cin, L_in)      flat input, L_in = H*W + 2*(pad*W + pad), zero halo
    w_ref:     (Cout, K*K*Cin)     weights, tap-major / Cin-minor along contraction
    b_ref:     (Cout, 1)           bias (f32)
    mask_ref:  (K, H*W)            per-kw column validity masks (0/1, input dtype)
    o_ref:     (1, Cout, H*W)      output tile (lane-dense flat NCHW)
    patch_ref: (K*K*Cin, H*W)      VMEM im2col scratch
    """
    L = H * W
    pad = K // 2

    # Load each column mask once (reused across all kh taps).
    mask_rows = [mask_ref[kw:kw + 1, :] for kw in range(K)]

    # im2col: patch[(kh*K + kw)*Cin + ci, p] = x[ci, h+kh-pad, w+kw-pad]  (p = h*W + w)
    # Row out-of-range reads land in the zero halo of the flat array; column "wrap"
    # reads are zeroed by the per-kw mask.  (Static Python loop → fully unrolled.)
    for kh in range(K):
        for kw in range(K):
            t = kh * K + kw
            s = kh * W + kw                        # static flat shift for this tap
            sl = x_ref[0, :, s:s + L]              # (Cin, L)
            if kw != pad:                          # center column tap never wraps
                sl = sl * mask_rows[kw]            # broadcast (1, L) over sublanes
            patch_ref[t * Cin:(t + 1) * Cin, :] = sl

    # Single fused MXU contraction: (Cout, K*K*Cin) @ (K*K*Cin, L) -> (Cout, L) in f32.
    acc = jnp.dot(w_ref[...], patch_ref[...], preferred_element_type=jnp.float32)
    acc = acc + b_ref[...]                         # bias once per tile, lane-broadcast
    o_ref[0] = acc.astype(o_ref.dtype)


def segmentation_head_forward(x_nchw, weight_oikk, bias, *, kernel_size=3):
    """Equivalent of SegmentationHead.forward (nn.Conv2d, padding=K//2, stride=1).

    x_nchw:      (N, Cin, H, W)
    weight_oikk: (Cout, Cin, K, K)   -- PyTorch Conv2d weight layout
    bias:        (Cout,)
    returns:     (N, Cout, H, W)
    """
    N, Cin, H, W = x_nchw.shape
    Cout, Cin_w, K, K2 = weight_oikk.shape
    assert Cin_w == Cin and K == K2 == kernel_size
    assert K % 2 == 1, "odd kernel size expected (padding = K//2)"
    pad = K // 2
    L = H * W
    halo = pad * W + pad               # flat halo covering the row padding + corner reach
    L_in = L + 2 * halo

    # ---- layout glue (no transposes) --------------------------------------------------
    x_flat = x_nchw.reshape(N, Cin, L)                                  # free (contiguous)
    x_flat = jnp.pad(x_flat, ((0, 0), (0, 0), (halo, halo)))            # single small pad

    # Weights -> (Cout, K*K*Cin): tap-major (kh*K + kw), Cin minor.  Tiny, done once.
    w2 = jnp.transpose(weight_oikk, (0, 2, 3, 1)).reshape(Cout, K * K * Cin)
    w2 = w2.astype(x_nchw.dtype)
    b2 = bias.reshape(Cout, 1).astype(jnp.float32)

    # Per-kw column-validity masks: flat shifts wrap across rows at the W boundary.
    col = jnp.arange(L, dtype=jnp.int32) % W
    col_mask = jnp.stack(
        [(col >= (pad - kw)) & (col < (W + pad - kw)) for kw in range(K)], axis=0
    ).astype(x_nchw.dtype)                                              # (K, L)

    kernel = functools.partial(_conv2d_kernel, H=H, W=W, K=K, Cin=Cin, Cout=Cout)

    itemsize = jnp.dtype(x_nchw.dtype).itemsize
    cost = pl.CostEstimate(
        flops=2 * N * L * K * K * Cin * Cout,
        transcendentals=0,
        bytes_accessed=(N * Cin * L_in + Cout * K * K * Cin + Cout
                        + K * L + N * Cout * L) * itemsize,
    )

    # Per-step VMEM footprint (double-buffered input/output blocks + resident operands
    # + im2col scratch).  Only raise the scoped limit when the default (32 MiB) is tight.
    vmem_est = (2 * Cin * L_in * itemsize          # input blocks (double-buffered)
                + Cout * K * K * Cin * itemsize    # weights
                + Cout * 4                         # bias (f32)
                + K * L * itemsize                 # column masks
                + 2 * Cout * L * itemsize          # output blocks (double-buffered)
                + K * K * Cin * L * itemsize)      # im2col scratch
    cp_kwargs = dict(dimension_semantics=("parallel",))
    if vmem_est > 24 * 1024 * 1024:
        cp_kwargs["vmem_limit_bytes"] = min(int(1.3 * vmem_est), 56 * 1024 * 1024)

    out_flat = pl.pallas_call(
        kernel,
        out_shape=jax.ShapeDtypeStruct((N, Cout, L), x_nchw.dtype),
        grid_spec=pltpu.PrefetchScalarGridSpec(
            num_scalar_prefetch=0,
            grid=(N,),
            in_specs=[
                pl.BlockSpec((1, Cin, L_in), lambda n: (n, 0, 0)),      # flat padded input
                pl.BlockSpec((Cout, K * K * Cin), lambda n: (0, 0)),    # weights (resident)
                pl.BlockSpec((Cout, 1), lambda n: (0, 0)),              # bias
                pl.BlockSpec((K, L), lambda n: (0, 0)),                 # column masks
            ],
            out_specs=pl.BlockSpec((1, Cout, L), lambda n: (n, 0, 0)),  # lane-dense output
            scratch_shapes=[pltpu.VMEM((K * K * Cin, L), x_nchw.dtype)],
        ),
        compiler_params=pltpu.CompilerParams(**cp_kwargs),
        cost_estimate=cost,
    )(x_flat, w2, b2, col_mask)

    return out_flat.reshape(N, Cout, H, W)                              # free (contiguous)


def _reference_conv2d(x_nchw, weight_oikk, bias):
    """Pure-JAX reference (lax.conv) for correctness check."""
    out = lax.conv_general_dilated(
        x_nchw, weight_oikk,
        window_strides=(1, 1),
        padding="SAME",
        dimension_numbers=("NCHW", "OIHW", "NCHW"),
    )
    return out + bias.reshape(1, -1, 1, 1)


if __name__ == "__main__":
    # SegmentationHead(in_channels=4, out_channels=8, kernel_size=3)
    N, Cin, H, W = 2, 4, 16, 16
    Cout, K = 8, 3

    key = jax.random.PRNGKey(0)
    k_x, k_w, k_b = jax.random.split(key, 3)

    x = jax.random.normal(k_x, (N, Cin, H, W), dtype=jnp.float32)
    # Deterministic synthetic parameters (PyTorch Conv2d shapes: (Cout, Cin, K, K), (Cout,))
    fan_in = Cin * K * K
    bound = 1.0 / (fan_in ** 0.5)
    weight = jax.random.uniform(k_w, (Cout, Cin, K, K), jnp.float32, -bound, bound)
    bias = jax.random.uniform(k_b, (Cout,), jnp.float32, -bound, bound)

    out = segmentation_head_forward(x, weight, bias, kernel_size=K)
    out = jax.block_until_ready(out)

    ref = _reference_conv2d(x, weight, bias)
    assert out.shape == (N, Cout, H, W)
    assert jnp.allclose(out, ref, atol=1e-4, rtol=1e-4), "mismatch vs reference conv"

    print("KERNEL_OK")
</pallas_src>

<mosaic_0001>
module attributes {stable_mosaic.version = 11 : i64} {
  func.func @_conv2d_kernel(%arg0: i32, %arg1: memref<1x4x290xf32, #tpu.memory_space<vmem>>, %arg2: memref<8x36xf32, #tpu.memory_space<vmem>>, %arg3: memref<8x1xf32, #tpu.memory_space<vmem>>, %arg4: memref<3x256xf32, #tpu.memory_space<vmem>>, %arg5: memref<1x8x256xf32, #tpu.memory_space<vmem>>, %arg6: memref<36x256xf32, #tpu.memory_space<vmem>>) attributes {dimension_semantics = [#tpu.dimension_semantics<parallel>], iteration_bounds = array<i64: 2>, scalar_prefetch = 0 : i64, scratch_operands = 1 : i64, tpu.core_type = #tpu.core_type<tc>, window_params = [{transform_indices = @transform_0, window_bounds = array<i64: 1, 4, 290>}, {pipeline_mode = #tpu.pipeline_mode<synchronous>, transform_indices = @transform_1, window_bounds = array<i64: 8, 36>}, {pipeline_mode = #tpu.pipeline_mode<synchronous>, transform_indices = @transform_2, window_bounds = array<i64: 8, 1>}, {pipeline_mode = #tpu.pipeline_mode<synchronous>, transform_indices = @transform_3, window_bounds = array<i64: 3, 256>}, {transform_indices = @transform_4, window_bounds = array<i64: 1, 8, 256>}]} {
    %c0 = arith.constant 0 : index
    %c0_0 = arith.constant 0 : index
    %0 = vector.load %arg4[%c0, %c0_0] : memref<3x256xf32, #tpu.memory_space<vmem>>, vector<1x256xf32>
    %c2 = arith.constant 2 : index
    %c0_1 = arith.constant 0 : index
    %1 = vector.load %arg4[%c2, %c0_1] : memref<3x256xf32, #tpu.memory_space<vmem>>, vector<1x256xf32>
    %c0_2 = arith.constant 0 : index
    %c0_3 = arith.constant 0 : index
    %c0_4 = arith.constant 0 : index
    %2 = vector.load %arg1[%c0_2, %c0_3, %c0_4] : memref<1x4x290xf32, #tpu.memory_space<vmem>>, vector<1x4x256xf32>
    %3 = vector.shape_cast %2 : vector<1x4x256xf32> to vector<4x256xf32>
    %4 = vector.broadcast %0 : vector<1x256xf32> to vector<4x256xf32>
    %5 = arith.mulf %3, %4 : vector<4x256xf32>
    %c0_5 = arith.constant 0 : index
    %c0_6 = arith.constant 0 : index
    %6 = vector.load %arg6[%c0_5, %c0_6] : memref<36x256xf32, #tpu.memory_space<vmem>>, vector<4x256xf32>
    tpu.vector_store %arg6[%c0_5, %c0_6], %5 {strides = array<i32>} : memref<36x256xf32, #tpu.memory_space<vmem>>, vector<4x256xf32>,
    %c0_7 = arith.constant 0 : index
    %c0_8 = arith.constant 0 : index
    %c1 = arith.constant 1 : index
    %7 = vector.load %arg1[%c0_7, %c0_8, %c1] : memref<1x4x290xf32, #tpu.memory_space<vmem>>, vector<1x4x256xf32>
    %8 = vector.shape_cast %7 : vector<1x4x256xf32> to vector<4x256xf32>
    %c4 = arith.constant 4 : index
    %c0_9 = arith.constant 0 : index
    %9 = vector.load %arg6[%c4, %c0_9] : memref<36x256xf32, #tpu.memory_space<vmem>>, vector<4x256xf32>
    tpu.vector_store %arg6[%c4, %c0_9], %8 {strides = array<i32>} : memref<36x256xf32, #tpu.memory_space<vmem>>, vector<4x256xf32>,
    %c0_10 = arith.constant 0 : index
    %c0_11 = arith.constant 0 : index
    %c2_12 = arith.constant 2 : index
    %10 = vector.load %arg1[%c0_10, %c0_11, %c2_12] : memref<1x4x290xf32, #tpu.memory_space<vmem>>, vector<1x4x256xf32>
    %11 = vector.shape_cast %10 : vector<1x4x256xf32> to vector<4x256xf32>
    %12 = vector.broadcast %1 : vector<1x256xf32> to vector<4x256xf32>
    %13 = arith.mulf %11, %12 : vector<4x256xf32>
    %c8 = arith.constant 8 : index
    %c0_13 = arith.constant 0 : index
    %14 = vector.load %arg6[%c8, %c0_13] : memref<36x256xf32, #tpu.memory_space<vmem>>, vector<4x256xf32>
    tpu.vector_store %arg6[%c8, %c0_13], %13 {strides = array<i32>} : memref<36x256xf32, #tpu.memory_space<vmem>>, vector<4x256xf32>,
    %c0_14 = arith.constant 0 : index
    %c0_15 = arith.constant 0 : index
    %c16 = arith.constant 16 : index
    %15 = vector.load %arg1[%c0_14, %c0_15, %c16] : memref<1x4x290xf32, #tpu.memory_space<vmem>>, vector<1x4x256xf32>
    %16 = vector.shape_cast %15 : vector<1x4x256xf32> to vector<4x256xf32>
    %17 = vector.broadcast %0 : vector<1x256xf32> to vector<4x256xf32>
    %18 = arith.mulf %16, %17 : vector<4x256xf32>
    %c12 = arith.constant 12 : index
    %c0_16 = arith.constant 0 : index
    %19 = vector.load %arg6[%c12, %c0_16] : memref<36x256xf32, #tpu.memory_space<vmem>>, vector<4x256xf32>
    tpu.vector_store %arg6[%c12, %c0_16], %18 {strides = array<i32>} : memref<36x256xf32, #tpu.memory_space<vmem>>, vector<4x256xf32>,
    %c0_17 = arith.constant 0 : index
    %c0_18 = arith.constant 0 : index
    %c17 = arith.constant 17 : index
    %20 = vector.load %arg1[%c0_17, %c0_18, %c17] : memref<1x4x290xf32, #tpu.memory_space<vmem>>, vector<1x4x256xf32>
    %21 = vector.shape_cast %20 : vector<1x4x256xf32> to vector<4x256xf32>
    %c16_19 = arith.constant 16 : index
    %c0_20 = arith.constant 0 : index
    %22 = vector.load %arg6[%c16_19, %c0_20] : memref<36x256xf32, #tpu.memory_space<vmem>>, vector<4x256xf32>
    tpu.vector_store %arg6[%c16_19, %c0_20], %21 {strides = array<i32>} : memref<36x256xf32, #tpu.memory_space<vmem>>, vector<4x256xf32>,
    %c0_21 = arith.constant 0 : index
    %c0_22 = arith.constant 0 : index
    %c18 = arith.constant 18 : index
    %23 = vector.load %arg1[%c0_21, %c0_22, %c18] : memref<1x4x290xf32, #tpu.memory_space<vmem>>, vector<1x4x256xf32>
    %24 = vector.shape_cast %23 : vector<1x4x256xf32> to vector<4x256xf32>
    %25 = vector.broadcast %1 : vector<1x256xf32> to vector<4x256xf32>
    %26 = arith.mulf %24, %25 : vector<4x256xf32>
    %c20 = arith.constant 20 : index
    %c0_23 = arith.constant 0 : index
    %27 = vector.load %arg6[%c20, %c0_23] : memref<36x256xf32, #tpu.memory_space<vmem>>, vector<4x256xf32>
    tpu.vector_store %arg6[%c20, %c0_23], %26 {strides = array<i32>} : memref<36x256xf32, #tpu.memory_space<vmem>>, vector<4x256xf32>,
    %c0_24 = arith.constant 0 : index
    %c0_25 = arith.constant 0 : index
    %c32 = arith.constant 32 : index
    %28 = vector.load %arg1[%c0_24, %c0_25, %c32] : memref<1x4x290xf32, #tpu.memory_space<vmem>>, vector<1x4x256xf32>
    %29 = vector.shape_cast %28 : vector<1x4x256xf32> to vector<4x256xf32>
    %30 = vector.broadcast %0 : vector<1x256xf32> to vector<4x256xf32>
    %31 = arith.mulf %29, %30 : vector<4x256xf32>
    %c24 = arith.constant 24 : index
    %c0_26 = arith.constant 0 : index
    %32 = vector.load %arg6[%c24, %c0_26] : memref<36x256xf32, #tpu.memory_space<vmem>>, vector<4x256xf32>
    tpu.vector_store %arg6[%c24, %c0_26], %31 {strides = array<i32>} : memref<36x256xf32, #tpu.memory_space<vmem>>, vector<4x256xf32>,
    %c0_27 = arith.constant 0 : index
    %c0_28 = arith.constant 0 : index
    %c33 = arith.constant 33 : index
    %33 = vector.load %arg1[%c0_27, %c0_28, %c33] : memref<1x4x290xf32, #tpu.memory_space<vmem>>, vector<1x4x256xf32>
    %34 = vector.shape_cast %33 : vector<1x4x256xf32> to vector<4x256xf32>
    %c28 = arith.constant 28 : index
    %c0_29 = arith.constant 0 : index
    %35 = vector.load %arg6[%c28, %c0_29] : memref<36x256xf32, #tpu.memory_space<vmem>>, vector<4x256xf32>
    tpu.vector_store %arg6[%c28, %c0_29], %34 {strides = array<i32>} : memref<36x256xf32, #tpu.memory_space<vmem>>, vector<4x256xf32>,
    %c0_30 = arith.constant 0 : index
    %c0_31 = arith.constant 0 : index
    %c34 = arith.constant 34 : index
    %36 = vector.load %arg1[%c0_30, %c0_31, %c34] : memref<1x4x290xf32, #tpu.memory_space<vmem>>, vector<1x4x256xf32>
    %37 = vector.shape_cast %36 : vector<1x4x256xf32> to vector<4x256xf32>
    %38 = vector.broadcast %1 : vector<1x256xf32> to vector<4x256xf32>
    %39 = arith.mulf %37, %38 : vector<4x256xf32>
    %c32_32 = arith.constant 32 : index
    %c0_33 = arith.constant 0 : index
    %40 = vector.load %arg6[%c32_32, %c0_33] : memref<36x256xf32, #tpu.memory_space<vmem>>, vector<4x256xf32>
    tpu.vector_store %arg6[%c32_32, %c0_33], %39 {strides = array<i32>} : memref<36x256xf32, #tpu.memory_space<vmem>>, vector<4x256xf32>,
    %c0_34 = arith.constant 0 : index
    %c0_35 = arith.constant 0 : index
    %41 = vector.load %arg2[%c0_34, %c0_35] : memref<8x36xf32, #tpu.memory_space<vmem>>, vector<8x36xf32>
    %c0_36 = arith.constant 0 : index
    %c0_37 = arith.constant 0 : index
    %42 = vector.load %arg6[%c0_36, %c0_37] : memref<36x256xf32, #tpu.memory_space<vmem>>, vector<36x256xf32>
    %cst = arith.constant dense<0.000000e+00> : vector<8x256xf32>
    %43 = tpu.matmul %41, %42, %cst {dimension_numbers = #tpu.dot_dimension_numbers<[1], [0], [0], [1], [0, 0, 1, 1], [], []>} : vector<8x36xf32>, vector<36x256xf32>, vector<8x256xf32> -> vector<8x256xf32>
    %c0_38 = arith.constant 0 : index
    %c0_39 = arith.constant 0 : index
    %44 = vector.load %arg3[%c0_38, %c0_39] : memref<8x1xf32, #tpu.memory_space<vmem>>, vector<8x1xf32>
    %45 = vector.broadcast %44 : vector<8x1xf32> to vector<8x256xf32>
    %46 = arith.addf %43, %45 : vector<8x256xf32>
    %c0_40 = arith.constant 0 : index
    %c0_41 = arith.constant 0 : index
    %c0_42 = arith.constant 0 : index
    %47 = vector.load %arg5[%c0_40, %c0_41, %c0_42] : memref<1x8x256xf32, #tpu.memory_space<vmem>>, vector<1x8x256xf32>
    %48 = vector.shape_cast %47 : vector<1x8x256xf32> to vector<8x256xf32>
    %49 = vector.shape_cast %46 : vector<8x256xf32> to vector<1x8x256xf32>
    tpu.vector_store %arg5[%c0_40, %c0_41, %c0_42], %49 {strides = array<i32>} : memref<1x8x256xf32, #tpu.memory_space<vmem>>, vector<1x8x256xf32>,
    return
  }
  func.func @transform_0(%arg0: i32) -> (i32, i32, i32) {
    %c0_i32 = arith.constant 0 : i32
    %c0_i32_0 = arith.constant 0 : i32
    %c0_i32_1 = arith.constant 0 : i32
    return %arg0, %c0_i32, %c0_i32_0 : i32, i32, i32
  }
  func.func @transform_1(%arg0: i32) -> (i32, i32) {
    %c0_i32 = arith.constant 0 : i32
    %c0_i32_0 = arith.constant 0 : i32
    %c0_i32_1 = arith.constant 0 : i32
    return %c0_i32, %c0_i32_0 : i32, i32
  }
  func.func @transform_2(%arg0: i32) -> (i32, i32) {
    %c0_i32 = arith.constant 0 : i32
    %c0_i32_0 = arith.constant 0 : i32
    %c0_i32_1 = arith.constant 0 : i32
    return %c0_i32, %c0_i32_0 : i32, i32
  }
  func.func @transform_3(%arg0: i32) -> (i32, i32) {
    %c0_i32 = arith.constant 0 : i32
    %c0_i32_0 = arith.constant 0 : i32
    %c0_i32_1 = arith.constant 0 : i32
    return %c0_i32, %c0_i32_0 : i32, i32
  }
  func.func @transform_4(%arg0: i32) -> (i32, i32, i32) {
    %c0_i32 = arith.constant 0 : i32
    %c0_i32_0 = arith.constant 0 : i32
    %c0_i32_1 = arith.constant 0 : i32
    return %arg0, %c0_i32, %c0_i32_0 : i32, i32, i32
  }
}

</mosaic_0001>

<llo_original>
// kernel: tpu_custom_call.1
$region0: #{tpu_custom_call.1}
  #allocation0 [shape = 'u32[]', space=smem, size = 0x4, offset = 0x4, fixed_abs, tag = 'smem constant byte address 0x4 - core index']
  #allocation1 [shape = 'u32[144,128]{1,0:T(1,128)}', space=vmem, size = 0x12000, scoped, tag = 'internal scratch']
  #allocation2 [shape = 'f32[36,256]{1,0:T(8,128)}', space=vmem, size = 0xa000, scoped, tag = 'scratch operand']
  %s0 = inlined_call_operand.hbm [shape: f32[2,4,290], index: 0, kind: input, shape index: {}]
  %s1 = inlined_call_operand.vmem [shape: f32[8,36], index: 1, kind: input, shape index: {}]
  %s2 = inlined_call_operand.vmem [shape: f32[8,1], index: 2, kind: input, shape index: {}]
  %s3 = inlined_call_operand.vmem [shape: f32[3,256], index: 3, kind: input, shape index: {}]
  %s4 = inlined_call_operand.hbm [shape: f32[2,8,256], index: 4, kind: output, shape index: {}]
  %s5 = sld [smem:[#allocation0]]
  $region53: #{tpu_custom_call.1} parent=0
    _
  %s7 = ssub.s32 1, %s5
  %s8 = scalar_select 0, %s7, %s5
  $region1: #{tpu_custom_call.1} parent=0
    #allocation3 [shape = 'u8[12288]{0}', space=vmem, size = 0x3000, scoped, tag = 'input window, operand 0']
    #allocation4 [shape = 's32[2]{0}', space=sflag, size = 0x8, scoped, tag = 'scoped memory for tpu_custom_call.1']
    #allocation5 [shape = 's32[2]{0}', space=sflag, size = 0x8, scoped, tag = 'scoped memory for tpu_custom_call.1']
    #allocation6 [shape = 'u8[16384]{0}', space=vmem, size = 0x4000, scoped, tag = 'output window, operand 0']
    %9 = vsyncpa [#allocation4], 0
    %s10 = scalar_lea.sflag [#allocation4], 1
    %11 = vsyncpa %s10, 0
    %12 = vsyncpa [#allocation5], 0
    %s13 = scalar_lea.sflag [#allocation5], 1
    %14 = vsyncpa %s13, 0
    loop: start=0, step=1, limit=4
    $region2: #{tpu_custom_call.1} parent=1 // loop_pre_header
      _
    $region3: #{tpu_custom_call.1} parent=1 // loop_header
      %s16 = sphi 0, %s20
      %p17 = scmp.ge.s32.totalorder %s16, 4
      %s26 = sphi 0, %s28
      %s29 = sphi 0, %s26
      %s30 = sphi 0, %s29
      %s46 = sphi 0, %s30
      %s50 = sphi 0, %s50
      %s52 = sphi 0, %s50
      %s53 = sphi 0, %s52
      %s67 = sphi 0, %s53
      %s71 = sphi 0, %s71
      %s73 = sphi 0, %s71
      %s74 = sphi 0, %s73
      %s88 = sphi 0, %s74
      %s92 = sphi 0, %s92
      %s94 = sphi 0, %s92
      %s95 = sphi 0, %s94
      %s109 = sphi 0, %s95
      %s115 = sphi 0, %s117
      %s118 = sphi 0, %s115
      %s119 = sphi 0, %s118
      %s135 = sphi 0, %s119
    $region4: #{tpu_custom_call.1} parent=1 // loop_header_branch
      %19 = sbr.rel (%p17) target = $region8
    $region5: #{tpu_custom_call.1} parent=1 // loop_body
      %s21 = ssub.s32 %s16, 1
      %s22 = ssub.s32 %s16, 2
      %s23 = sadd.s32 %s16, 1
      %s24 = ssub.s32 %s16, %s23
      %p25 = scmp.eq.s32.totalorder %s24, 0
      %s27 = sadd.s32 %s26, 1
      %s28 = scalar_select %p25, %s26, %s27
      %p31 = pneg %p25
      %p32 = scmp.eq.s32.totalorder %s16, 1
      %p33 = por %p31, %p32
      %p34 = scmp.ne.s32.totalorder %s26, %s29
      %p35 = scmp.eq.s32.totalorder %s16, 0
      %p36 = por %p34, %p35
      %p37 = scmp.ne.s32.totalorder %s26, %s29
      %p38 = scmp.eq.s32.totalorder %s21, 1
      %p39 = por %p37, %p38
      %p40 = scmp.ne.s32.totalorder %s29, %s30
      %p41 = scmp.eq.s32.totalorder %s21, 0
      %p42 = por %p40, %p41
      %p43 = scmp.ne.s32.totalorder %s29, %s30
      %p44 = scmp.eq.s32.totalorder %s22, 1
      %p45 = por %p43, %p44
      %p47 = scmp.ne.s32.totalorder %s30, %s46
      %p48 = scmp.eq.s32.totalorder %s22, 0
      %p49 = por %p47, %p48
      %s51 = sadd.s32 %s50, 1
      %p54 = scmp.eq.s32.totalorder %s16, 1
      %p55 = scmp.ne.s32.totalorder %s50, %s52
      %p56 = scmp.eq.s32.totalorder %s16, 0
      %p57 = por %p55, %p56
      %p58 = scmp.ne.s32.totalorder %s50, %s52
      %p59 = scmp.eq.s32.totalorder %s21, 1
      %p60 = por %p58, %p59
      %p61 = scmp.ne.s32.totalorder %s52, %s53
      %p62 = scmp.eq.s32.totalorder %s21, 0
      %p63 = por %p61, %p62
      %p64 = scmp.ne.s32.totalorder %s52, %s53
      %p65 = scmp.eq.s32.totalorder %s22, 1
      %p66 = por %p64, %p65
      %p68 = scmp.ne.s32.totalorder %s53, %s67
      %p69 = scmp.eq.s32.totalorder %s22, 0
      %p70 = por %p68, %p69
      %s72 = sadd.s32 %s71, 1
      %p75 = scmp.eq.s32.totalorder %s16, 1
      %p76 = scmp.ne.s32.totalorder %s71, %s73
      %p77 = scmp.eq.s32.totalorder %s16, 0
      %p78 = por %p76, %p77
      %p79 = scmp.ne.s32.totalorder %s71, %s73
      %p80 = scmp.eq.s32.totalorder %s21, 1
      %p81 = por %p79, %p80
      %p82 = scmp.ne.s32.totalorder %s73, %s74
      %p83 = scmp.eq.s32.totalorder %s21, 0
      %p84 = por %p82, %p83
      %p85 = scmp.ne.s32.totalorder %s73, %s74
      %p86 = scmp.eq.s32.totalorder %s22, 1
      %p87 = por %p85, %p86
      %p89 = scmp.ne.s32.totalorder %s74, %s88
      %p90 = scmp.eq.s32.totalorder %s22, 0
      %p91 = por %p89, %p90
      %s93 = sadd.s32 %s92, 1
      %p96 = scmp.eq.s32.totalorder %s16, 1
      %p97 = scmp.ne.s32.totalorder %s92, %s94
      %p98 = scmp.eq.s32.totalorder %s16, 0
      %p99 = por %p97, %p98
      %p100 = scmp.ne.s32.totalorder %s92, %s94
      %p101 = scmp.eq.s32.totalorder %s21, 1
      %p102 = por %p100, %p101
      %p103 = scmp.ne.s32.totalorder %s94, %s95
      %p104 = scmp.eq.s32.totalorder %s21, 0
      %p105 = por %p103, %p104
      %p106 = scmp.ne.s32.totalorder %s94, %s95
      %p107 = scmp.eq.s32.totalorder %s22, 1
      %p108 = por %p106, %p107
      %p110 = scmp.ne.s32.totalorder %s95, %s109
      %p111 = scmp.eq.s32.totalorder %s22, 0
      %p112 = por %p110, %p111
      %s113 = ssub.s32 %s16, %s23
      %p114 = scmp.eq.s32.totalorder %s113, 0
      %s116 = sadd.s32 %s115, 1
      %s117 = scalar_select %p114, %s115, %s116
      %p120 = pneg %p114
      %p121 = scmp.eq.s32.totalorder %s16, 1
      %p122 = por %p120, %p121
      %p123 = scmp.ne.s32.totalorder %s115, %s118
      %p124 = scmp.eq.s32.totalorder %s16, 0
      %p125 = por %p123, %p124
      %p126 = scmp.ne.s32.totalorder %s115, %s118
      %p127 = scmp.eq.s32.totalorder %s21, 1
      %p128 = por %p126, %p127
      %p129 = scmp.ne.s32.totalorder %s118, %s119
      %p130 = scmp.eq.s32.totalorder %s21, 0
      %p131 = por %p129, %p130
      %p132 = scmp.ne.s32.totalorder %s118, %s119
      %p133 = scmp.eq.s32.totalorder %s22, 1
      %p134 = por %p132, %p133
      %p136 = scmp.ne.s32.totalorder %s119, %s135
      %p137 = scmp.eq.s32.totalorder %s22, 0
      %p138 = por %p136, %p137
      %p139 = scmp.le.s32.totalorder 1, %s16
      %p140 = scmp.lt.s32.totalorder %s16, 3
      %p141 = pnand %p139, %p140
      %p142 = pneg %p141
      // Predicated region
      $region9: #{tpu_custom_call.1} parent=5 // pred_check
        _
      $region10: #{tpu_custom_call.1} parent=5 // pred_check_branch
        %144 = sbr.rel (%p141) target = $region12
      $region11: #{tpu_custom_call.1} parent=5 // pred_region
        %s145 = ssub.s32 %s16, 1
        // Predicated region
        $region13: #{tpu_custom_call.1} parent=11 // pred_check
          %p146 = pneg %p63
        $region14: #{tpu_custom_call.1} parent=11 // pred_check_branch
          %148 = sbr.rel (%p146) target = $region16
        $region15: #{tpu_custom_call.1} parent=11 // pred_region
          _
        $region16: #{tpu_custom_call.1} parent=11 // pred_fallthru
          _
        // Predicated region
        $region17: #{tpu_custom_call.1} parent=11 // pred_check
          %p149 = pneg %p84
        $region18: #{tpu_custom_call.1} parent=11 // pred_check_branch
          %151 = sbr.rel (%p149) target = $region20
        $region19: #{tpu_custom_call.1} parent=11 // pred_region
          _
        $region20: #{tpu_custom_call.1} parent=11 // pred_fallthru
          _
        // Predicated region
        $region21: #{tpu_custom_call.1} parent=11 // pred_check
          %p152 = pneg %p105
        $region22: #{tpu_custom_call.1} parent=11 // pred_check_branch
          %154 = sbr.rel (%p152) target = $region24
        $region23: #{tpu_custom_call.1} parent=11 // pred_region
          _
        $region24: #{tpu_custom_call.1} parent=11 // pred_fallthru
          _
      $region12: #{tpu_custom_call.1} parent=5 // pred_fallthru
        _
      %p155 = scmp.lt.s32.totalorder %s16, 2
      // Predicated region
      $region25: #{tpu_custom_call.1} parent=5 // pred_check
        %p156 = pneg %p155
      $region26: #{tpu_custom_call.1} parent=5 // pred_check_branch
        %158 = sbr.rel (%p156) target = $region28
      $region27: #{tpu_custom_call.1} parent=5 // pred_region
        // Predicated region
        $region29: #{tpu_custom_call.1} parent=27 // pred_check
          %p159 = pneg %p36
        $region30: #{tpu_custom_call.1} parent=27 // pred_check_branch
          %161 = sbr.rel (%p159) target = $region32
        $region31: #{tpu_custom_call.1} parent=27 // pred_region
          %s162 = sand.u32 %s26, 1
          %s163 = scalar_lea.sflag [#allocation4], %s162
          %s164 = sand.u32 %s26, 1
          %s165 = smul.addr %s164, 12
          %s166 = scalar_lea.vmem [#allocation3], %s165
          %s168 = ssub.s32 192, 192
          %169 = vsyncadd %s163, %s168
          %s170 = smul.addr %s16, 3
          %s171 = smul.addr %s170, 64
          %s172 = scalar_lea.hbm %s0, %s171
          %s174 = sshll.u32 %s166, 4
          %s175 = int_to_ptr.vmem [resolvable:$true] %s174
          %177 = dma.hbm_to_vmem [thread:$0]  %s172, 192, %s175, %s163
        $region32: #{tpu_custom_call.1} parent=27 // pred_fallthru
          _
      $region28: #{tpu_custom_call.1} parent=5 // pred_fallthru
        _
      %p178 = scmp.le.s32.totalorder 1, %s16
      %p179 = scmp.lt.s32.totalorder %s16, 3
      %p180 = pnand %p178, %p179
      %p181 = pneg %p180
      // Predicated region
      $region33: #{tpu_custom_call.1} parent=5 // pred_check
        _
      $region34: #{tpu_custom_call.1} parent=5 // pred_check_branch
        %183 = sbr.rel (%p180) target = $region36
      $region35: #{tpu_custom_call.1} parent=5 // pred_region
        %s184 = ssub.s32 %s16, 1
        %s185 = sand.u32 %s29, 1
        %s186 = scalar_lea.sflag [#allocation4], %s185
        %s187 = sand.u32 %s29, 1
        %s188 = smul.addr %s187, 12
        %s189 = scalar_lea.vmem [#allocation3], %s188
        // Predicated region
        $region37: #{tpu_custom_call.1} parent=35 // pred_check
          %p190 = pneg %p42
        $region38: #{tpu_custom_call.1} parent=35 // pred_check_branch
          %192 = sbr.rel (%p190) target = $region40
        $region39: #{tpu_custom_call.1} parent=35 // pred_region
          %193 = dma.done %s186, 192
        $region40: #{tpu_custom_call.1} parent=35 // pred_fallthru
          _
        %s194 = sand.u32 %s29, 1
        %s195 = scalar_lea.sflag [#allocation4], %s194
        %s196 = sand.u32 %s29, 1
        %s197 = smul.addr %s196, 12
        %s198 = scalar_lea.vmem [#allocation3], %s197
        %p199 = pneg %p42
        %p200 = pneg %p39
        %p201 = pneg %p63
        %p202 = pneg %p60
        %p203 = pneg %p84
        %p204 = pneg %p81
        %p205 = pneg %p105
        %p206 = pneg %p102
        %p207 = pneg %p131
        %p208 = pneg %p128
        %s209 = sand.u32 %s118, 1
        %s210 = scalar_lea.sflag [#allocation5], %s209
        %s211 = sand.u32 %s118, 1
        %s212 = smul.addr %s211, 16
        %s213 = scalar_lea.vmem [#allocation6], %s212
        %v214 = vld [vmem:[%s3] ss:$4 sm:$0x3]
        %s215 = scalar_lea.vmem %s3, 2
        %v216 = vld [vmem:[%s215] ss:$4 sm:$0x3]
        %v217 = vld [vmem:[%s189] sm:$0xff]
        %v219 = vlaneseq
        %v220 = vshrl.u32 %v219, 7
        %v221 = vsub.s32 0, %v220
        %v222 = vrot.slane %v214, %v221
        %v223 = vlaneseq
        %v224 = vshrl.u32 %v223, 7
        %v225 = vsub.s32 1, %v224
        %v226 = vrot.slane %v214, %v225
        %v227 = vcombine.low %v222, %v226
        %v229 = vmul.f32 %v217, %v227
        %v231 = vcombine.high %v229, %v229
        %233 = vst [vmem:[#allocation2] sm:$0xf] %v229
        %234 = vst [vmem:[#allocation2 + $0x8] sm:$0xf] %v231
        %v235 = vld [vmem:[%s189] sm:$0xff]
        %v236 = vld [vmem:[%s189 + $0x8] sm:$0xf]
        %v239 = vcombine.low %v235, %v235
        %v240 = vcombine.low %v236, %v236
        %241 = vrot.lane.b32.xlu0 %v239, 127
        %v242 = vpop.permute.xlu0 %241
        %243 = vrot.lane.b32.xlu0 %v235, 127
        %v244 = vpop.permute.xlu0 %243
        %245 = vrot.lane.b32.xlu0 %v240, 127
        %v246 = vpop.permute.xlu0 %245
        %vm247 = vcmask 1039360
        %v248 = vsel %vm247, %v242, %v244
        %v249 = vsel %vm247, %v244, %v246
        %252 = vst [vmem:[#allocation2] sm:$0xf0] %v248
        %253 = vst [vmem:[#allocation2 + $0x8] sm:$0xf0] %v249
        %v254 = vld [vmem:[%s189] sm:$0xff]
        %v255 = vld [vmem:[%s189 + $0x8] sm:$0xf]
        %v257 = vlaneseq
        %v258 = vshrl.u32 %v257, 7
        %v259 = vsub.s32 0, %v258
        %v260 = vrot.slane %v216, %v259
        %v261 = vlaneseq
        %v262 = vshrl.u32 %v261, 7
        %v263 = vsub.s32 1, %v262
        %v264 = vrot.slane %v216, %v263
        %v265 = vcombine.low %v260, %v264
        %266 = vrot.lane.b32.xlu0 %v265, 2
        %v267 = vpop.permute.xlu0 %266
        %v268 = vrot.slane %v267, 4
        %vm269 = vcmask 15360
        %v270 = vsel %vm269, %v268, %v267
        %v273 = vmul.f32 %v254, %v270
        %v274 = vmul.f32 %v255, %v268
        %v277 = vcombine.high %v273, %v273
        %278 = vrot.lane.b32.xlu0 %v273, 126
        %v279 = vpop.permute.xlu0 %278
        %280 = vrot.lane.b32.xlu0 %v277, 126
        %v281 = vpop.permute.xlu0 %280
        %282 = vrot.lane.b32.xlu0 %v274, 126
        %v283 = vpop.permute.xlu0 %282
        %vm284 = vcmask 1031168
        %v285 = vsel %vm284, %v279, %v281
        %v286 = vsel %vm284, %v281, %v283
        %289 = vst [vmem:[#allocation2 + $0x10] sm:$0xf] %v285
        %290 = vst [vmem:[#allocation2 + $0x18] sm:$0xf] %v286
        %v291 = vld [vmem:[%s189] sm:$0xff]
        %v292 = vld [vmem:[%s189 + $0x8] sm:$0xf]
        %293 = vrot.lane.b32.xlu0 %v227, 16
        %v294 = vpop.permute.xlu0 %293
        %v295 = vrot.slane %v294, 4
        %vm296 = vcmask 130048
        %v297 = vsel %vm296, %v295, %v294
        %v300 = vmul.f32 %v291, %v297
        %v301 = vmul.f32 %v292, %v295
        %v304 = vcombine.low %v300, %v300
        %v305 = vcombine.low %v301, %v301
        %306 = vrot.lane.b32.xlu0 %v304, 112
        %v307 = vpop.permute.xlu0 %306
        %308 = vrot.lane.b32.xlu0 %v300, 112
        %v309 = vpop.permute.xlu0 %308
        %310 = vrot.lane.b32.xlu0 %v305, 112
        %v311 = vpop.permute.xlu0 %310
        %vm312 = vcmask 916480
        %v313 = vsel %vm312, %v307, %v309
        %v314 = vsel %vm312, %v309, %v311
        %317 = vst [vmem:[#allocation2 + $0x10] sm:$0xf0] %v313
        %318 = vst [vmem:[#allocation2 + $0x18] sm:$0xf0] %v314
        %v319 = vld [vmem:[%s189] sm:$0xff]
        %v320 = vld [vmem:[%s189 + $0x8] sm:$0xf]
        %v323 = vcombine.high %v319, %v319
        %324 = vrot.lane.b32.xlu0 %v319, 111
        %v325 = vpop.permute.xlu0 %324
        %326 = vrot.lane.b32.xlu0 %v323, 111
        %v327 = vpop.permute.xlu0 %326
        %328 = vrot.lane.b32.xlu0 %v320, 111
        %v329 = vpop.permute.xlu0 %328
        %vm330 = vcmask 908288
        %v331 = vsel %vm330, %v325, %v327
        %v332 = vsel %vm330, %v327, %v329
        %335 = vst [vmem:[#allocation2 + $0x20] sm:$0xf] %v331
        %336 = vst [vmem:[#allocation2 + $0x28] sm:$0xf] %v332
        %v337 = vld [vmem:[%s189] sm:$0xff]
        %v338 = vld [vmem:[%s189 + $0x8] sm:$0xf]
        %339 = vrot.lane.b32.xlu0 %v265, 18
        %v340 = vpop.permute.xlu0 %339
        %v341 = vrot.slane %v340, 4
        %vm342 = vcmask 146432
        %v343 = vsel %vm342, %v341, %v340
        %v346 = vmul.f32 %v337, %v343
        %v347 = vmul.f32 %v338, %v341
        %v350 = vcombine.low %v346, %v346
        %v351 = vcombine.low %v347, %v347
        %352 = vrot.lane.b32.xlu0 %v350, 110
        %v353 = vpop.permute.xlu0 %352
        %354 = vrot.lane.b32.xlu0 %v346, 110
        %v355 = vpop.permute.xlu0 %354
        %356 = vrot.lane.b32.xlu0 %v351, 110
        %v357 = vpop.permute.xlu0 %356
        %vm358 = vcmask 900096
        %v359 = vsel %vm358, %v353, %v355
        %v360 = vsel %vm358, %v355, %v357
        %363 = vst [vmem:[#allocation2 + $0x20] sm:$0xf0] %v359
        %364 = vst [vmem:[#allocation2 + $0x28] sm:$0xf0] %v360
        %v365 = vld [vmem:[%s189] sm:$0xff]
        %v366 = vld [vmem:[%s189 + $0x8] sm:$0xf]
        %367 = vrot.lane.b32.xlu0 %v227, 32
        %v368 = vpop.permute.xlu0 %367
        %v369 = vrot.slane %v368, 4
        %vm370 = vcmask 261120
        %v371 = vsel %vm370, %v369, %v368
        %v374 = vmul.f32 %v365, %v371
        %v375 = vmul.f32 %v366, %v369
        %v378 = vcombine.high %v374, %v374
        %379 = vrot.lane.b32.xlu0 %v374, 96
        %v380 = vpop.permute.xlu0 %379
        %381 = vrot.lane.b32.xlu0 %v378, 96
        %v382 = vpop.permute.xlu0 %381
        %383 = vrot.lane.b32.xlu0 %v375, 96
        %v384 = vpop.permute.xlu0 %383
        %vm385 = vcmask 785408
        %v386 = vsel %vm385, %v380, %v382
        %v387 = vsel %vm385, %v382, %v384
        %390 = vst [vmem:[#allocation2 + $0x30] sm:$0xf] %v386
        %391 = vst [vmem:[#allocation2 + $0x38] sm:$0xf] %v387
        %v392 = vld [vmem:[%s189] sm:$0xff]
        %v393 = vld [vmem:[%s189 + $0x8] sm:$0xf]
        %v396 = vcombine.low %v392, %v392
        %v397 = vcombine.low %v393, %v393
        %398 = vrot.lane.b32.xlu0 %v396, 95
        %v399 = vpop.permute.xlu0 %398
        %400 = vrot.lane.b32.xlu0 %v392, 95
        %v401 = vpop.permute.xlu0 %400
        %402 = vrot.lane.b32.xlu0 %v397, 95
        %v403 = vpop.permute.xlu0 %402
        %vm404 = vcmask 777216
        %v405 = vsel %vm404, %v399, %v401
        %v406 = vsel %vm404, %v401, %v403
        %409 = vst [vmem:[#allocation2 + $0x30] sm:$0xf0] %v405
        %410 = vst [vmem:[#allocation2 + $0x38] sm:$0xf0] %v406
        %v411 = vld [vmem:[%s189] sm:$0xff]
        %v412 = vld [vmem:[%s189 + $0x8] sm:$0xf]
        %413 = vrot.lane.b32.xlu0 %v265, 34
        %v414 = vpop.permute.xlu0 %413
        %v415 = vrot.slane %v414, 4
        %vm416 = vcmask 277504
        %v417 = vsel %vm416, %v415, %v414
        %v420 = vmul.f32 %v411, %v417
        %v421 = vmul.f32 %v412, %v415
        %v424 = vcombine.high %v420, %v420
        %425 = vrot.lane.b32.xlu0 %v420, 94
        %v426 = vpop.permute.xlu0 %425
        %427 = vrot.lane.b32.xlu0 %v424, 94
        %v428 = vpop.permute.xlu0 %427
        %429 = vrot.lane.b32.xlu0 %v421, 94
        %v430 = vpop.permute.xlu0 %429
        %vm431 = vcmask 769024
        %v432 = vsel %vm431, %v426, %v428
        %v433 = vsel %vm431, %v428, %v430
        %436 = vst [vmem:[#allocation2 + $0x40] sm:$0xf] %v432
        %437 = vst [vmem:[#allocation2 + $0x48] sm:$0xf] %v433
        %v438 = vld [vmem:[%s1] sm:$0xff]
        %v439 = vld [vmem:[#allocation2] sm:$0xff]
        %v440 = vld [vmem:[#allocation2 + $0x8] sm:$0xff]
        %v441 = vld [vmem:[#allocation2 + $0x10] sm:$0xff]
        %v442 = vld [vmem:[#allocation2 + $0x18] sm:$0xff]
        %v443 = vld [vmem:[#allocation2 + $0x20] sm:$0xff]
        %v444 = vld [vmem:[#allocation2 + $0x28] sm:$0xff]
        %v445 = vld [vmem:[#allocation2 + $0x30] sm:$0xff]
        %v446 = vld [vmem:[#allocation2 + $0x38] sm:$0xff]
        %v447 = vld [vmem:[#allocation2 + $0x40] sm:$0xf]
        %v448 = vld [vmem:[#allocation2 + $0x48] sm:$0xf]
        %v449 = vld [vmem:[%s2] sm:$0xff]
        %451 = vset.pattern.permute.xlu0 0
        %452 = vperm.xlu0 %451, %v449
        %v453 = vpop.permute.xlu0 %452
        %vm455 = vcmask 293888
        %v457 = vsel %vm455, %v438, 0
        %vm459 = vcmask 1043456
        %v461 = vsel %vm459, %v447, 0
        %v464 = vsel %vm459, %v448, 0
        %466 = vmatprep.subr.mxu0 %v440
        %467 = vmatpush1.msra.mxu0 %v439
        %468 = vmatprep.subr.mxu0 %v442
        %469 = vmatpush1.msra.mxu0 %v441
        %470 = vmatprep.subr.mxu0 %v444
        %471 = vmatpush1.msra.mxu0 %v443
        %472 = vmatprep.subr.mxu0 %v446
        %473 = vmatpush1.msra.mxu0 %v445
        %474 = vmatprep.subr.mxu0 %v464
        %475 = vmatpush1.msra.mxu0 %v461
        %476 = vmatprep.subr.mxu0 0.0
        %477 = vmatpush1.msra.mxu0 0.0
        %478 = vmatprep.subr.mxu0 0.0
        %479 = vmatpush1.msra.mxu0 0.0
        %480 = vmatprep.subr.mxu0 0.0
        %481 = vmatpush1.msra.mxu0 0.0
        %482 = vmatprep.subr.mxu0 0.0
        %483 = vmatpush1.msra.mxu0 0.0
        %484 = vmatprep.subr.mxu0 0.0
        %485 = vmatpush1.msra.mxu0 0.0
        %486 = vmatprep.subr.mxu0 0.0
        %487 = vmatpush1.msra.mxu0 0.0
        %488 = vmatprep.subr.mxu0 0.0
        %489 = vmatpush1.msra.mxu0 0.0
        %490 = vmatprep.subr.mxu0 0.0
        %491 = vmatpush1.msra.mxu0 0.0
        %492 = vmatprep.subr.mxu0 0.0
        %493 = vmatpush1.msra.mxu0 0.0
        %494 = vmatprep.subr.mxu0 0.0
        %495 = vmatpush1.msra.mxu0 0.0
        %496 = vmatprep.subr.mxu0 0.0
        %497 = vmatpush1.msra.mxu0 0.0
        %498 = vmatprep.subr.mxu0 0.0
        %499 = vmatpush1.msra.mxu0 0.0
        %500 = vmatprep.subr.mxu0 0.0
        %501 = vmatpush1.msra.mxu0 0.0
        %502 = vmatprep.subr.mxu0 0.0
        %503 = vmatpush1.msra.mxu0 0.0
        %504 = vmatprep.subr.mxu0 0.0
        %505 = vmatpush1.msra.mxu0 0.0
        %506 = vmatprep.subr.mxu0 0.0
        %507 = vmatpush1.msra.mxu0 0.0
        %508 = vmatprep.subr.mxu0 0.0
        %509 = vmatpush1.msra.mxu0 0.0
        %510 = vmatprep.subr.mxu0 0.0
        %511 = vmatpush1.msra.mxu0 0.0
        %512 = vmatprep.subr.mxu0 0.0
        %513 = vmatpush1.msra.mxu0 0.0
        %514 = vmatprep.subr.mxu0 0.0
        %515 = vmatpush1.msra.mxu0 0.0
        %516 = vmatprep.subr.mxu0 0.0
        %517 = vmatpush1.msra.mxu0 0.0
        %518 = vmatprep.subr.mxu0 0.0
        %519 = vmatpush1.msra.mxu0 0.0
        %520 = vmatprep.subr.mxu0 0.0
        %521 = vmatpush1.msra.mxu0 0.0
        %522 = vmatprep.subr.mxu0 0.0
        %523 = vmatpush1.msra.mxu0 0.0
        %524 = vmatprep.subr.mxu0 0.0
        %525 = vmatpush1.msra.mxu0 0.0
        %526 = vmatprep.subr.mxu0 0.0
        %527 = vmatpush1.msra.mxu0 0.0
        %528 = vmatprep.subr.mxu0 0.0
        %529 = vmatpush1.msra.mxu0 0.0
        %530 = vmatprep.mubr.f32.mxu0 0.0
        %531 = vmatmul.mubr.f32.gmra.mrb[0].mxu0 %v457
        %v532 = vpop.f32.mrb[0].mxu0
        %v533 = vadd.f32 %v453, %v532
        %v534 = vpop.f32.mrb[0].mxu0
        %v535 = vadd.f32 %v453, %v534
        %536 = vdwg.mxu0
        %537 = vst [vmem:[%s213] sm:$0xff] %v533
        %538 = vst [vmem:[%s213 + $0x8] sm:$0xff] %v535
        %s539 = sand.u32 %s118, 1
        %s540 = scalar_lea.sflag [#allocation5], %s539
        %s541 = sand.u32 %s118, 1
        %s542 = smul.addr %s541, 16
        %s543 = scalar_lea.vmem [#allocation6], %s542
        // Predicated region
        $region41: #{tpu_custom_call.1} parent=35 // pred_check
          %p544 = pneg %p128
        $region42: #{tpu_custom_call.1} parent=35 // pred_check_branch
          %546 = sbr.rel (%p544) target = $region44
        $region43: #{tpu_custom_call.1} parent=35 // pred_region
          %s548 = ssub.s32 256, 256
          %549 = vsyncadd %s540, %s548
          %s550 = smul.addr %s21, 2
          %s551 = smul.addr %s550, 128
          %s552 = scalar_lea.hbm %s4, %s551
          %s554 = sshll.u32 %s543, 4
          %s555 = int_to_ptr.vmem [resolvable:$true] %s554
          %557 = dma.vmem_to_hbm [thread:$0]  %s555, 256, %s552, %s540
        $region44: #{tpu_custom_call.1} parent=35 // pred_fallthru
          _
      $region36: #{tpu_custom_call.1} parent=5 // pred_fallthru
        _
      %p558 = scmp.le.s32.totalorder 2, %s16
      // Predicated region
      $region45: #{tpu_custom_call.1} parent=5 // pred_check
        %p559 = pneg %p558
      $region46: #{tpu_custom_call.1} parent=5 // pred_check_branch
        %561 = sbr.rel (%p559) target = $region48
      $region47: #{tpu_custom_call.1} parent=5 // pred_region
        %s562 = ssub.s32 %s16, 2
        // Predicated region
        $region49: #{tpu_custom_call.1} parent=47 // pred_check
          %p563 = pneg %p134
        $region50: #{tpu_custom_call.1} parent=47 // pred_check_branch
          %565 = sbr.rel (%p563) target = $region52
        $region51: #{tpu_custom_call.1} parent=47 // pred_region
          %s566 = sand.u32 %s119, 1
          %s567 = scalar_lea.sflag [#allocation5], %s566
          %s568 = sand.u32 %s119, 1
          %s569 = smul.addr %s568, 16
          %s570 = scalar_lea.vmem [#allocation6], %s569
          %571 = dma.done %s567, 256
        $region52: #{tpu_custom_call.1} parent=47 // pred_fallthru
          _
      $region48: #{tpu_custom_call.1} parent=5 // pred_fallthru
        _
    $region6: #{tpu_custom_call.1} parent=1 // loop_footer
      %s20 = sadd.s32 1, %s16
    $region7: #{tpu_custom_call.1} parent=1 // loop_footer_branch
      %15 = sbr.rel target = $region3
    $region8: #{tpu_custom_call.1} parent=1 // loop_exit
      _
    %572 = vsyncpa [#allocation4], 1
    %s573 = scalar_lea.sflag [#allocation4], 1
    %574 = vsyncpa %s573, 1
    %575 = vsyncpa [#allocation5], 1
    %s576 = scalar_lea.sflag [#allocation5], 1
    %577 = vsyncpa %s576, 1

</llo_original>
